<compile_context>
chip_gen: v5e
topology: v5e:2x2
jax: 0.10.0
libtpu: 0.0.40
codegen_flags: <defaults>
</compile_context>

<pallas_src>
import functools
import math

import jax
import jax.numpy as jnp
from jax.experimental import pallas as pl
from jax.experimental.pallas import tpu as pltpu


def _xw_kernel(x_ref, w_ref, xw_ref):
    # xw = x @ W, full-precision accumulate.
    xw_ref[...] = jnp.dot(
        x_ref[...], w_ref[...], preferred_element_type=jnp.float32
    ).astype(xw_ref.dtype)


def _gcnii_kernel(adj_ref, xw_ref, h0_ref, b_ref, out_ref, acc_ref, *, alpha):
    k = pl.program_id(1)

    @pl.when(k == 0)
    def _():
        acc_ref[...] = jnp.zeros_like(acc_ref)

    # hi accumulation over the contraction (column) tiles of adj.
    acc_ref[...] += jnp.dot(
        adj_ref[...], xw_ref[...], preferred_element_type=jnp.float32
    )

    @pl.when(k == pl.num_programs(1) - 1)
    def _():
        # variant=False: r == support, so theta*support + (1-theta)*r == support.
        out = (1.0 - alpha) * acc_ref[...] + alpha * h0_ref[...] + b_ref[...]
        out_ref[...] = out.astype(out_ref.dtype)


def _pick_tile(n, cap, granule):
    """Largest multiple of `granule` <= min(cap, n) that divides n, else n (full)."""
    cap = min(cap, n)
    t = (cap // granule) * granule
    while t >= granule:
        if n % t == 0:
            return t
        t -= granule
    return n


def gcnii_layer(x, adj, h0, weight, bias, lamda, alpha, l, *,
                row_tile=None, k_tile=None):
    N, Fin = x.shape
    Fout = weight.shape[1]
    out_dtype = x.dtype

    # theta is algebraically irrelevant for variant=False (kept for clarity).
    _theta = math.log(lamda / l + 1.0)

    # --- lane-dense feature padding: Fout -> multiple of 128 -----------------
    Fout_p = -(-Fout // 128) * 128
    pad = Fout_p - Fout
    weight_p = jnp.pad(weight, ((0, 0), (0, pad))).astype(jnp.float32)
    h0_p = jnp.pad(h0, ((0, 0), (0, pad))).astype(jnp.float32)
    bias_p = jnp.pad(bias, ((0, 0), (0, pad))).astype(jnp.float32)

    # --- tiling ---------------------------------------------------------------
    if row_tile is None:
        row_tile = _pick_tile(N, 512, 8)       # sublane granule
    if k_tile is None:
        k_tile = _pick_tile(N, 1024, 128)      # lane granule (contraction dim)
    assert N % row_tile == 0 and N % k_tile == 0

    vmem_limit = 64 * 1024 * 1024

    # --- stage 1: xw = x @ W (hoisted, row-parallel) ---------------------------
    xw = pl.pallas_call(
        _xw_kernel,
        out_shape=jax.ShapeDtypeStruct((N, Fout_p), jnp.float32),
        grid_spec=pltpu.PrefetchScalarGridSpec(
            num_scalar_prefetch=0,
            grid=(N // row_tile,),
            in_specs=[
                pl.BlockSpec((row_tile, Fin), lambda i: (i, 0)),
                pl.BlockSpec((Fin, Fout_p), lambda i: (0, 0)),
            ],
            out_specs=pl.BlockSpec((row_tile, Fout_p), lambda i: (i, 0)),
        ),
        compiler_params=pltpu.CompilerParams(
            dimension_semantics=("parallel",),
            vmem_limit_bytes=vmem_limit),
    )(x.astype(jnp.float32), weight_p)

    # --- stage 2: out = (1-alpha) * adj @ xw + alpha * h0 + bias ---------------
    kernel = functools.partial(_gcnii_kernel, alpha=float(alpha))

    out_p = pl.pallas_call(
        kernel,
        out_shape=jax.ShapeDtypeStruct((N, Fout_p), out_dtype),
        grid_spec=pltpu.PrefetchScalarGridSpec(
            num_scalar_prefetch=0,
            grid=(N // row_tile, N // k_tile),
            in_specs=[
                pl.BlockSpec((row_tile, k_tile), lambda i, k: (i, k)),    # adj tile
                pl.BlockSpec((k_tile, Fout_p), lambda i, k: (k, 0)),      # xw tile
                pl.BlockSpec((row_tile, Fout_p), lambda i, k: (i, 0)),    # h0 tile
                pl.BlockSpec((1, Fout_p), lambda i, k: (0, 0)),           # bias
            ],
            out_specs=pl.BlockSpec((row_tile, Fout_p), lambda i, k: (i, 0)),
            scratch_shapes=[pltpu.VMEM((row_tile, Fout_p), jnp.float32)],
        ),
        compiler_params=pltpu.CompilerParams(
            dimension_semantics=("parallel", "arbitrary"),
            vmem_limit_bytes=vmem_limit),
    )(adj, xw, h0_p, bias_p)

    return out_p[:, :Fout]


if __name__ == "__main__":
    key = jax.random.PRNGKey(0)
    N, Fin, Fout = 256, 64, 64  # in_features == out_features (required by h0 residual add)
    k1, k2, k3, k4 = jax.random.split(key, 4)

    x = jax.random.normal(k1, (N, Fin), jnp.float32)
    adj = jax.random.uniform(k2, (N, N), jnp.float32)
    adj = adj / jnp.sum(adj, axis=1, keepdims=True)  # row-normalized adjacency
    h0 = jax.random.normal(k3, (N, Fout), jnp.float32)

    # Parameters (deterministic): xavier_normal_ with gain=0.02, bias = 0
    std = 0.02 * math.sqrt(2.0 / (Fin + Fout))
    weight = std * jax.random.normal(k4, (Fin, Fout), jnp.float32)
    bias = jnp.zeros((1, Fout), jnp.float32)

    lamda, alpha, l = 0.5, 0.1, 1

    out = gcnii_layer(x, adj, h0, weight, bias, lamda, alpha, l)
    jax.block_until_ready(out)

    # Pure-JAX f32 reference of the exact PyTorch semantics
    theta = math.log(lamda / l + 1.0)
    hi = adj @ (x @ weight)
    support = (1.0 - alpha) * hi + alpha * h0
    r = support
    ref = theta * support + (1.0 - theta) * r + bias

    assert out.shape == ref.shape
    assert jnp.allclose(out, ref, atol=1e-3, rtol=1e-3), float(
        jnp.max(jnp.abs(out - ref)))

    print("KERNEL_OK")
</pallas_src>

<mosaic_0001>
module attributes {stable_mosaic.version = 11 : i64} {
  func.func @_xw_kernel(%arg0: i32, %arg1: memref<256x64xf32, #tpu.memory_space<vmem>>, %arg2: memref<64x128xf32, #tpu.memory_space<vmem>>, %arg3: memref<256x128xf32, #tpu.memory_space<vmem>>) attributes {dimension_semantics = [#tpu.dimension_semantics<parallel>], iteration_bounds = array<i64: 1>, scalar_prefetch = 0 : i64, scratch_operands = 0 : i64, tpu.core_type = #tpu.core_type<tc>, window_params = [{transform_indices = @transform_0, window_bounds = array<i64: 256, 64>}, {pipeline_mode = #tpu.pipeline_mode<synchronous>, transform_indices = @transform_1, window_bounds = array<i64: 64, 128>}, {transform_indices = @transform_2, window_bounds = array<i64: 256, 128>}]} {
    %c0 = arith.constant 0 : index
    %c0_0 = arith.constant 0 : index
    %0 = vector.load %arg1[%c0, %c0_0] : memref<256x64xf32, #tpu.memory_space<vmem>>, vector<256x64xf32>
    %c0_1 = arith.constant 0 : index
    %c0_2 = arith.constant 0 : index
    %1 = vector.load %arg2[%c0_1, %c0_2] : memref<64x128xf32, #tpu.memory_space<vmem>>, vector<64x128xf32>
    %cst = arith.constant dense<0.000000e+00> : vector<256x128xf32>
    %2 = tpu.matmul %0, %1, %cst {dimension_numbers = #tpu.dot_dimension_numbers<[1], [0], [0], [1], [0, 0, 1, 1], [], []>} : vector<256x64xf32>, vector<64x128xf32>, vector<256x128xf32> -> vector<256x128xf32>
    %c0_3 = arith.constant 0 : index
    %c0_4 = arith.constant 0 : index
    %3 = vector.load %arg3[%c0_3, %c0_4] : memref<256x128xf32, #tpu.memory_space<vmem>>, vector<256x128xf32>
    tpu.vector_store %arg3[%c0_3, %c0_4], %2 {strides = array<i32>} : memref<256x128xf32, #tpu.memory_space<vmem>>, vector<256x128xf32>,
    return
  }
  func.func @transform_0(%arg0: i32) -> (i32, i32) {
    %c0_i32 = arith.constant 0 : i32
    %c0_i32_0 = arith.constant 0 : i32
    return %arg0, %c0_i32 : i32, i32
  }
  func.func @transform_1(%arg0: i32) -> (i32, i32) {
    %c0_i32 = arith.constant 0 : i32
    %c0_i32_0 = arith.constant 0 : i32
    %c0_i32_1 = arith.constant 0 : i32
    return %c0_i32, %c0_i32_0 : i32, i32
  }
  func.func @transform_2(%arg0: i32) -> (i32, i32) {
    %c0_i32 = arith.constant 0 : i32
    %c0_i32_0 = arith.constant 0 : i32
    return %arg0, %c0_i32 : i32, i32
  }
}

</mosaic_0001>

<llo_original>
// kernel: tpu_custom_call.1
$region0: #{tpu_custom_call.1}
  #allocation0 [shape = 'u32[]', space=smem, size = 0x4, offset = 0x4, fixed_abs, tag = 'smem constant byte address 0x4 - core index']
  #allocation1 [shape = 'u32[72,128]{1,0:T(1,128)}', space=vmem, size = 0x9000, scoped, tag = 'internal scratch']
  %s0 = inlined_call_operand.vmem [shape: f32[256,64], index: 0, kind: input, shape index: {}]
  %s1 = inlined_call_operand.vmem [shape: f32[64,128], index: 1, kind: input, shape index: {}]
  %s2 = inlined_call_operand.hbm [shape: f32[256,128], index: 2, kind: output, shape index: {}]
  %s3 = sld [smem:[#allocation0]]
  $region18: #{tpu_custom_call.1} parent=0
    _
  %s5 = ssub.s32 1, %s3
  %s6 = scalar_select 0, %s5, %s3
  $region1: #{tpu_custom_call.1} parent=0
    #allocation2 [shape = 'u8[131072]{0}', space=vmem, size = 0x20000, scoped, tag = 'output window, operand 0, single buffered']
    #allocation3 [shape = 's32[1]{0}', space=sflag, size = 0x4, scoped, tag = 'scoped memory for tpu_custom_call.1']
    %7 = vsyncpa [#allocation3], 0
    // Predicated region
    $region2: #{tpu_custom_call.1} parent=1 // pred_check
      _
    $region3: #{tpu_custom_call.1} parent=1 // pred_check_branch
      %9 = sbr.rel (0) target = $region5
    $region4: #{tpu_custom_call.1} parent=1 // pred_region
      _
    $region5: #{tpu_custom_call.1} parent=1 // pred_fallthru
      _
    // Predicated region
    $region6: #{tpu_custom_call.1} parent=1 // pred_check
      _
    $region7: #{tpu_custom_call.1} parent=1 // pred_check_branch
      %11 = sbr.rel (0) target = $region9
    $region8: #{tpu_custom_call.1} parent=1 // pred_region
      _
    $region9: #{tpu_custom_call.1} parent=1 // pred_fallthru
      _
    %v12 = vld [vmem:[%s0] sm:$0xff]
    %v13 = vld [vmem:[%s0 + $0x8] sm:$0xff]
    %v14 = vld [vmem:[%s0 + $0x10] sm:$0xff]
    %v15 = vld [vmem:[%s0 + $0x18] sm:$0xff]
    %v16 = vld [vmem:[%s0 + $0x20] sm:$0xff]
    %v17 = vld [vmem:[%s0 + $0x28] sm:$0xff]
    %v18 = vld [vmem:[%s0 + $0x30] sm:$0xff]
    %v19 = vld [vmem:[%s0 + $0x38] sm:$0xff]
    %v20 = vld [vmem:[%s0 + $0x40] sm:$0xff]
    %v21 = vld [vmem:[%s0 + $0x48] sm:$0xff]
    %v22 = vld [vmem:[%s0 + $0x50] sm:$0xff]
    %v23 = vld [vmem:[%s0 + $0x58] sm:$0xff]
    %v24 = vld [vmem:[%s0 + $0x60] sm:$0xff]
    %v25 = vld [vmem:[%s0 + $0x68] sm:$0xff]
    %v26 = vld [vmem:[%s0 + $0x70] sm:$0xff]
    %v27 = vld [vmem:[%s0 + $0x78] sm:$0xff]
    %v28 = vld [vmem:[%s0 + $0x80] sm:$0xff]
    %v29 = vld [vmem:[%s0 + $0x88] sm:$0xff]
    %v30 = vld [vmem:[%s0 + $0x90] sm:$0xff]
    %v31 = vld [vmem:[%s0 + $0x98] sm:$0xff]
    %v32 = vld [vmem:[%s0 + $0xa0] sm:$0xff]
    %v33 = vld [vmem:[%s0 + $0xa8] sm:$0xff]
    %v34 = vld [vmem:[%s0 + $0xb0] sm:$0xff]
    %v35 = vld [vmem:[%s0 + $0xb8] sm:$0xff]
    %v36 = vld [vmem:[%s0 + $0xc0] sm:$0xff]
    %v37 = vld [vmem:[%s0 + $0xc8] sm:$0xff]
    %v38 = vld [vmem:[%s0 + $0xd0] sm:$0xff]
    %v39 = vld [vmem:[%s0 + $0xd8] sm:$0xff]
    %v40 = vld [vmem:[%s0 + $0xe0] sm:$0xff]
    %v41 = vld [vmem:[%s0 + $0xe8] sm:$0xff]
    %v42 = vld [vmem:[%s0 + $0xf0] sm:$0xff]
    %v43 = vld [vmem:[%s0 + $0xf8] sm:$0xff]
    %v44 = vld [vmem:[%s1] sm:$0xff]
    %v45 = vld [vmem:[%s1 + $0x8] sm:$0xff]
    %v46 = vld [vmem:[%s1 + $0x10] sm:$0xff]
    %v47 = vld [vmem:[%s1 + $0x18] sm:$0xff]
    %v48 = vld [vmem:[%s1 + $0x20] sm:$0xff]
    %v49 = vld [vmem:[%s1 + $0x28] sm:$0xff]
    %v50 = vld [vmem:[%s1 + $0x30] sm:$0xff]
    %v51 = vld [vmem:[%s1 + $0x38] sm:$0xff]
    %vm52 = vcmask 523264
    %v54 = vsel %vm52, %v12, 0
    %v57 = vsel %vm52, %v13, 0
    %v60 = vsel %vm52, %v14, 0
    %v63 = vsel %vm52, %v15, 0
    %v66 = vsel %vm52, %v16, 0
    %v69 = vsel %vm52, %v17, 0
    %v72 = vsel %vm52, %v18, 0
    %v75 = vsel %vm52, %v19, 0
    %v78 = vsel %vm52, %v20, 0
    %v81 = vsel %vm52, %v21, 0
    %v84 = vsel %vm52, %v22, 0
    %v87 = vsel %vm52, %v23, 0
    %v90 = vsel %vm52, %v24, 0
    %v93 = vsel %vm52, %v25, 0
    %v96 = vsel %vm52, %v26, 0
    %v99 = vsel %vm52, %v27, 0
    %v102 = vsel %vm52, %v28, 0
    %v105 = vsel %vm52, %v29, 0
    %v108 = vsel %vm52, %v30, 0
    %v111 = vsel %vm52, %v31, 0
    %v114 = vsel %vm52, %v32, 0
    %v117 = vsel %vm52, %v33, 0
    %v120 = vsel %vm52, %v34, 0
    %v123 = vsel %vm52, %v35, 0
    %v126 = vsel %vm52, %v36, 0
    %v129 = vsel %vm52, %v37, 0
    %v132 = vsel %vm52, %v38, 0
    %v135 = vsel %vm52, %v39, 0
    %v138 = vsel %vm52, %v40, 0
    %v141 = vsel %vm52, %v41, 0
    %v144 = vsel %vm52, %v42, 0
    %v147 = vsel %vm52, %v43, 0
    %149 = vmatpush.msra.mxu0 0.0
    %150 = vmatpush.msra.mxu0 0.0
    %151 = vmatpush.msra.mxu0 0.0
    %152 = vmatpush.msra.mxu0 0.0
    %153 = vmatpush.msra.mxu0 0.0
    %154 = vmatpush.msra.mxu0 0.0
    %155 = vmatpush.msra.mxu0 0.0
    %156 = vmatpush.msra.mxu0 0.0
    %157 = vmatpush.msra.mxu0 %v51
    %158 = vmatpush.msra.mxu0 %v50
    %159 = vmatpush.msra.mxu0 %v49
    %160 = vmatpush.msra.mxu0 %v48
    %161 = vmatpush.msra.mxu0 %v47
    %162 = vmatpush.msra.mxu0 %v46
    %163 = vmatpush.msra.mxu0 %v45
    %164 = vmatpush.msra.mxu0 %v44
    %165 = vmatmul.f32.gmra.mxu0 %v54
    %v166 = vpop.f32.mrf.mxu0
    %v167 = vadd.f32 0.0, %v166
    %168 = vmatmul.f32.gmra.mxu0 %v57
    %v169 = vpop.f32.mrf.mxu0
    %v170 = vadd.f32 0.0, %v169
    %171 = vmatmul.f32.gmra.mxu0 %v60
    %v172 = vpop.f32.mrf.mxu0
    %v173 = vadd.f32 0.0, %v172
    %174 = vmatmul.f32.gmra.mxu0 %v63
    %v175 = vpop.f32.mrf.mxu0
    %v176 = vadd.f32 0.0, %v175
    %177 = vmatmul.f32.gmra.mxu0 %v66
    %v178 = vpop.f32.mrf.mxu0
    %v179 = vadd.f32 0.0, %v178
    %180 = vmatmul.f32.gmra.mxu0 %v69
    %v181 = vpop.f32.mrf.mxu0
    %v182 = vadd.f32 0.0, %v181
    %183 = vmatmul.f32.gmra.mxu0 %v72
    %v184 = vpop.f32.mrf.mxu0
    %v185 = vadd.f32 0.0, %v184
    %186 = vmatmul.f32.gmra.mxu0 %v75
    %v187 = vpop.f32.mrf.mxu0
    %v188 = vadd.f32 0.0, %v187
    %189 = vmatmul.f32.gmra.mxu0 %v78
    %v190 = vpop.f32.mrf.mxu0
    %v191 = vadd.f32 0.0, %v190
    %192 = vmatmul.f32.gmra.mxu0 %v81
    %v193 = vpop.f32.mrf.mxu0
    %v194 = vadd.f32 0.0, %v193
    %195 = vmatmul.f32.gmra.mxu0 %v84
    %v196 = vpop.f32.mrf.mxu0
    %v197 = vadd.f32 0.0, %v196
    %198 = vmatmul.f32.gmra.mxu0 %v87
    %v199 = vpop.f32.mrf.mxu0
    %v200 = vadd.f32 0.0, %v199
    %201 = vmatmul.f32.gmra.mxu0 %v90
    %v202 = vpop.f32.mrf.mxu0
    %v203 = vadd.f32 0.0, %v202
    %204 = vmatmul.f32.gmra.mxu0 %v93
    %v205 = vpop.f32.mrf.mxu0
    %v206 = vadd.f32 0.0, %v205
    %207 = vmatmul.f32.gmra.mxu0 %v96
    %v208 = vpop.f32.mrf.mxu0
    %v209 = vadd.f32 0.0, %v208
    %210 = vmatmul.f32.gmra.mxu0 %v99
    %v211 = vpop.f32.mrf.mxu0
    %v212 = vadd.f32 0.0, %v211
    %213 = vmatmul.f32.gmra.mxu0 %v102
    %v214 = vpop.f32.mrf.mxu0
    %v215 = vadd.f32 0.0, %v214
    %216 = vmatmul.f32.gmra.mxu0 %v105
    %v217 = vpop.f32.mrf.mxu0
    %v218 = vadd.f32 0.0, %v217
    %219 = vmatmul.f32.gmra.mxu0 %v108
    %v220 = vpop.f32.mrf.mxu0
    %v221 = vadd.f32 0.0, %v220
    %222 = vmatmul.f32.gmra.mxu0 %v111
    %v223 = vpop.f32.mrf.mxu0
    %v224 = vadd.f32 0.0, %v223
    %225 = vmatmul.f32.gmra.mxu0 %v114
    %v226 = vpop.f32.mrf.mxu0
    %v227 = vadd.f32 0.0, %v226
    %228 = vmatmul.f32.gmra.mxu0 %v117
    %v229 = vpop.f32.mrf.mxu0
    %v230 = vadd.f32 0.0, %v229
    %231 = vmatmul.f32.gmra.mxu0 %v120
    %v232 = vpop.f32.mrf.mxu0
    %v233 = vadd.f32 0.0, %v232
    %234 = vmatmul.f32.gmra.mxu0 %v123
    %v235 = vpop.f32.mrf.mxu0
    %v236 = vadd.f32 0.0, %v235
    %237 = vmatmul.f32.gmra.mxu0 %v126
    %v238 = vpop.f32.mrf.mxu0
    %v239 = vadd.f32 0.0, %v238
    %240 = vmatmul.f32.gmra.mxu0 %v129
    %v241 = vpop.f32.mrf.mxu0
    %v242 = vadd.f32 0.0, %v241
    %243 = vmatmul.f32.gmra.mxu0 %v132
    %v244 = vpop.f32.mrf.mxu0
    %v245 = vadd.f32 0.0, %v244
    %246 = vmatmul.f32.gmra.mxu0 %v135
    %v247 = vpop.f32.mrf.mxu0
    %v248 = vadd.f32 0.0, %v247
    %249 = vmatmul.f32.gmra.mxu0 %v138
    %v250 = vpop.f32.mrf.mxu0
    %v251 = vadd.f32 0.0, %v250
    %252 = vmatmul.f32.gmra.mxu0 %v141
    %v253 = vpop.f32.mrf.mxu0
    %v254 = vadd.f32 0.0, %v253
    %255 = vmatmul.f32.gmra.mxu0 %v144
    %v256 = vpop.f32.mrf.mxu0
    %v257 = vadd.f32 0.0, %v256
    %258 = vmatmul.f32.gmra.mxu0 %v147
    %v259 = vpop.f32.mrf.mxu0
    %v260 = vadd.f32 0.0, %v259
    %261 = vdwg.mxu0
    %262 = vst [vmem:[#allocation2] sm:$0xff] %v167
    %263 = vst [vmem:[#allocation2 + $0x8] sm:$0xff] %v170
    %264 = vst [vmem:[#allocation2 + $0x10] sm:$0xff] %v173
    %265 = vst [vmem:[#allocation2 + $0x18] sm:$0xff] %v176
    %266 = vst [vmem:[#allocation2 + $0x20] sm:$0xff] %v179
    %267 = vst [vmem:[#allocation2 + $0x28] sm:$0xff] %v182
    %268 = vst [vmem:[#allocation2 + $0x30] sm:$0xff] %v185
    %269 = vst [vmem:[#allocation2 + $0x38] sm:$0xff] %v188
    %270 = vst [vmem:[#allocation2 + $0x40] sm:$0xff] %v191
    %271 = vst [vmem:[#allocation2 + $0x48] sm:$0xff] %v194
    %272 = vst [vmem:[#allocation2 + $0x50] sm:$0xff] %v197
    %273 = vst [vmem:[#allocation2 + $0x58] sm:$0xff] %v200
    %274 = vst [vmem:[#allocation2 + $0x60] sm:$0xff] %v203
    %275 = vst [vmem:[#allocation2 + $0x68] sm:$0xff] %v206
    %276 = vst [vmem:[#allocation2 + $0x70] sm:$0xff] %v209
    %277 = vst [vmem:[#allocation2 + $0x78] sm:$0xff] %v212
    %278 = vst [vmem:[#allocation2 + $0x80] sm:$0xff] %v215
    %279 = vst [vmem:[#allocation2 + $0x88] sm:$0xff] %v218
    %280 = vst [vmem:[#allocation2 + $0x90] sm:$0xff] %v221
    %281 = vst [vmem:[#allocation2 + $0x98] sm:$0xff] %v224
    %282 = vst [vmem:[#allocation2 + $0xa0] sm:$0xff] %v227
    %283 = vst [vmem:[#allocation2 + $0xa8] sm:$0xff] %v230
    %284 = vst [vmem:[#allocation2 + $0xb0] sm:$0xff] %v233
    %285 = vst [vmem:[#allocation2 + $0xb8] sm:$0xff] %v236
    %286 = vst [vmem:[#allocation2 + $0xc0] sm:$0xff] %v239
    %287 = vst [vmem:[#allocation2 + $0xc8] sm:$0xff] %v242
    %288 = vst [vmem:[#allocation2 + $0xd0] sm:$0xff] %v245
    %289 = vst [vmem:[#allocation2 + $0xd8] sm:$0xff] %v248
    %290 = vst [vmem:[#allocation2 + $0xe0] sm:$0xff] %v251
    %291 = vst [vmem:[#allocation2 + $0xe8] sm:$0xff] %v254
    %292 = vst [vmem:[#allocation2 + $0xf0] sm:$0xff] %v257
    %293 = vst [vmem:[#allocation2 + $0xf8] sm:$0xff] %v260
    // Predicated region
    $region10: #{tpu_custom_call.1} parent=1 // pred_check
      _
    $region11: #{tpu_custom_call.1} parent=1 // pred_check_branch
      %295 = sbr.rel (0) target = $region13
    $region12: #{tpu_custom_call.1} parent=1 // pred_region
      %297 = vsyncadd [#allocation3], 0
      %s298 = sshll.u32 [#allocation2], 4
      %s299 = int_to_ptr.vmem [resolvable:$true] %s298
      %s300 = sshll.u32 %s2, 4
      %s301 = int_to_ptr.hbm [resolvable:$true] %s300
      %306 = dma.vmem_to_hbm [thread:$0]  %s299, 4096, %s301, [#allocation3], 128, 128, 8
    $region13: #{tpu_custom_call.1} parent=1 // pred_fallthru
      _
    // Predicated region
    $region14: #{tpu_custom_call.1} parent=1 // pred_check
      _
    $region15: #{tpu_custom_call.1} parent=1 // pred_check_branch
      %308 = sbr.rel (0) target = $region17
    $region16: #{tpu_custom_call.1} parent=1 // pred_region
      %310 = dma.done [#allocation3], 4096
    $region17: #{tpu_custom_call.1} parent=1 // pred_fallthru
      _
    %311 = vsyncpa [#allocation3], 1

</llo_original>
